<compile_context>
chip_gen: v6e
topology: v6e:2x2x1
jax: 0.10.0
libtpu: 0.0.40
codegen_flags: <defaults>
</compile_context>

<pallas_src>
import functools

import jax
import jax.numpy as jnp
from jax.experimental import pallas as pl
from jax.experimental.pallas import tpu as pltpu


_LANE = 128
_FAST_PATH_ELEMS = 1 << 20   # B * in_dim * n_pad below this -> plain XLA dot


def _round_up(v, m):
    return ((v + m - 1) // m) * m


@functools.lru_cache(maxsize=1)
def _vmem_plan():
    """Returns (vmem_limit_bytes or None, tile VMEM budget bytes) per chip gen."""
    try:
        kind = jax.devices()[0].device_kind.lower()
    except Exception:
        kind = ""
    if "v7" in kind:
        # v7x: 64 MiB physical VMEM per TensorCore -> budget conservatively.
        return 40 << 20, 28 << 20
    if ("v5 lite" in kind) or ("v5e" in kind) or ("v6" in kind):
        # v5e / v6e: 128 MiB physical; raise the small default scoped limit
        # (16 / 32 MiB) so larger batch tiles are allowed.
        return 64 << 20, 48 << 20
    # Unknown chip: stay inside the default scoped VMEM limit.
    return None, 12 << 20


def _pick_batch_tile(B, per_row_bytes, budget_bytes):
    """Batch tile: multiple of 8 sublanes, fits the VMEM budget, <= 2048 rows,
    and >= 2 grid steps for large B so v7x's two TensorCores both engage."""
    if B <= 8:
        return B                                   # equals full dim -> legal layout
    cap = min(2048, budget_bytes // max(per_row_bytes, 1), (B // 8) * 8)
    cap = max(8, (cap // 8) * 8)
    min_steps = 2 if B >= 1024 else 1
    n_steps = max(min_steps, pl.cdiv(B, cap))
    tb = _round_up(pl.cdiv(B, n_steps), 8)
    return max(8, min(tb, cap))


def neural_net2_kernel(x_ref, w2_ref, b2_ref, out_ref):
    """out = x @ w2_t + b2 for one batch tile (the only observable part of
    NeuralNet2.forward; linear1/relu are dead code)."""
    x = x_ref[...]
    if x.dtype != w2_ref.dtype:
        x = x.astype(w2_ref.dtype)                 # feed the MXU bf16
    acc = jnp.dot(x, w2_ref[...], preferred_element_type=jnp.float32)
    out_ref[...] = (acc + b2_ref[...]).astype(out_ref.dtype)


def prepare_params(w2, b2, compute_dtype=jnp.bfloat16):
    """One-time weight prep, hoisted out of the per-call forward.

    Returns (w2_t, b2_row): w2 transposed to [in_dim, n_pad] with the class dim
    zero-padded to a multiple of 128 lanes and cast to `compute_dtype`; b2
    padded to [1, n_pad] and kept f32 (bias add happens in f32).
    """
    num_classes, in_dim = w2.shape
    n_pad = _round_up(num_classes, _LANE)
    # NOTE: on v6e, round n_pad to 256 once num_classes > 128 to fill the
    # 256-wide MXU (irrelevant while HBM-bound at small class counts).
    w2_t = (jnp.zeros((in_dim, n_pad), dtype=compute_dtype)
            .at[:, :num_classes].set(w2.T.astype(compute_dtype)))
    b2_row = (jnp.zeros((1, n_pad), dtype=jnp.float32)
              .at[:, :num_classes].set(b2.astype(jnp.float32)[None, :]))
    return w2_t, b2_row


def neural_net2_apply(x, w2_t, b2_row, num_classes, *, out_dtype=None):
    """Forward pass with pre-prepared linear2 params. Returns [B, num_classes]."""
    B, in_dim = x.shape
    if w2_t.shape[0] != in_dim:
        raise ValueError(
            f"x feature dim {in_dim} != prepared weight in_dim {w2_t.shape[0]} "
            "(NeuralNet2's forward applies linear2 directly to x, so "
            "input_size must equal hidden_size)")
    n_pad = w2_t.shape[1]
    if out_dtype is None:
        out_dtype = x.dtype

    # Fast path: tiny problems are dispatch/overhead bound; let XLA fuse.
    if B * in_dim * n_pad < _FAST_PATH_ELEMS:
        out = jnp.dot(x.astype(w2_t.dtype), w2_t,
                      preferred_element_type=jnp.float32) + b2_row
        return out[:, :num_classes].astype(out_dtype)

    slab_dtype = w2_t.dtype            # bf16 output slab: the dominant HBM stream
    vmem_limit, tile_budget = _vmem_plan()

    # The pipeline double-buffers every block; the grid-invariant weight/bias
    # blocks are small here, so the wasted second copy is negligible.
    # TODO(synk): once in_dim * n_pad * itemsize approaches the VMEM budget, add
    # a K grid axis with an f32 accumulator (pl.when init/finalize) and mark the
    # weight BlockSpec pipeline_mode=pl.Buffered(1).
    weight_bytes = 2 * (w2_t.size * w2_t.dtype.itemsize
                        + b2_row.size * b2_row.dtype.itemsize)
    per_row = (2 * in_dim * x.dtype.itemsize
               + 2 * n_pad * jnp.dtype(slab_dtype).itemsize)
    tb = _pick_batch_tile(B, per_row, max(tile_budget - weight_bytes, per_row * 8))
    grid = (pl.cdiv(B, tb),)

    cost = pl.CostEstimate(
        flops=2 * B * in_dim * n_pad,
        transcendentals=0,
        bytes_accessed=(x.size * x.dtype.itemsize
                        + w2_t.size * w2_t.dtype.itemsize
                        + b2_row.size * b2_row.dtype.itemsize
                        + B * n_pad * jnp.dtype(slab_dtype).itemsize),
    )

    out_padded = pl.pallas_call(
        neural_net2_kernel,
        out_shape=jax.ShapeDtypeStruct((B, n_pad), slab_dtype),
        grid=grid,
        in_specs=[
            pl.BlockSpec((tb, in_dim), lambda i: (i, 0)),      # batch tile of x
            pl.BlockSpec((in_dim, n_pad), lambda i: (0, 0)),   # w2^T, VMEM-resident
            pl.BlockSpec((1, n_pad), lambda i: (0, 0)),        # b2, VMEM-resident
        ],
        out_specs=pl.BlockSpec((tb, n_pad), lambda i: (i, 0)),  # lane-dense slab
        compiler_params=pltpu.CompilerParams(
            dimension_semantics=("parallel",),
            vmem_limit_bytes=vmem_limit,
        ),
        cost_estimate=cost,
    )(x, w2_t, b2_row)

    # Strip the lane padding outside the kernel, then cast to the caller dtype.
    return out_padded[:, :num_classes].astype(out_dtype)


def neural_net2_forward(x, w1, b1, w2, b2, *, compute_dtype=jnp.bfloat16):
    """Convenience wrapper matching the PyTorch module parameter set.

    w1/b1 are dead in the original forward (linear1/relu results are
    immediately overwritten), so they never enter the kernel. For repeated
    inference call prepare_params() once and neural_net2_apply() per batch so
    the weight transpose/pad/cast is not redone every call.
    """
    del w1, b1   # dead in the original forward
    if x.shape[1] != w2.shape[1]:
        raise ValueError(
            f"x feature dim {x.shape[1]} != linear2 in_features {w2.shape[1]}")
    B, in_dim = x.shape
    num_classes = w2.shape[0]
    n_pad = _round_up(num_classes, _LANE)
    if B * in_dim * n_pad < _FAST_PATH_ELEMS:
        # Tiny problem: skip Pallas (and weight prep) entirely; full f32.
        return (jnp.dot(x, w2.T, preferred_element_type=jnp.float32)
                + b2.astype(jnp.float32)).astype(x.dtype)
    w2_t, b2_row = prepare_params(w2, b2, compute_dtype)
    return neural_net2_apply(x, w2_t, b2_row, num_classes, out_dtype=x.dtype)


def reference_forward(x, w1, b1, w2, b2):
    # Pure-JAX reference reproducing the PyTorch forward semantics.
    _ = jnp.dot(x, w1.T) + b1        # dead
    _ = jnp.maximum(x, 0.0)          # dead
    return jnp.dot(x, w2.T) + b2


if __name__ == "__main__":
    # input_size must equal hidden_size for the original PyTorch forward to
    # execute (linear2 is applied directly to x).
    input_size = 128
    hidden_size = 128
    num_classes = 10
    batch = 300          # deliberately ragged vs the batch tile -> masked edge

    key = jax.random.PRNGKey(0)
    k_x, k_w1, k_b1, k_w2, k_b2 = jax.random.split(key, 5)

    x = jax.random.normal(k_x, (batch, input_size), dtype=jnp.float32)

    # Deterministic init mimicking nn.Linear's U(-1/sqrt(fan_in), 1/sqrt(fan_in)).
    bound1 = 1.0 / (input_size ** 0.5)
    w1 = jax.random.uniform(k_w1, (hidden_size, input_size), jnp.float32,
                            -bound1, bound1)
    b1 = jax.random.uniform(k_b1, (hidden_size,), jnp.float32, -bound1, bound1)
    bound2 = 1.0 / (hidden_size ** 0.5)
    w2 = jax.random.uniform(k_w2, (num_classes, hidden_size), jnp.float32,
                            -bound2, bound2)
    b2 = jax.random.uniform(k_b2, (num_classes,), jnp.float32, -bound2, bound2)

    ref = reference_forward(x, w1, b1, w2, b2)

    # --- Pallas path: weights prepared once, bf16 MXU compute, ragged tiles ---
    w2_t, b2_row = prepare_params(w2, b2)
    out = neural_net2_apply(x, w2_t, b2_row, num_classes)
    out = jax.block_until_ready(out)
    assert out.shape == (batch, num_classes)
    assert out.dtype == x.dtype
    # bf16 MXU inputs + bf16 output slab -> ~2-3 decimal digits of precision.
    assert jnp.allclose(out, ref, atol=3e-2, rtol=3e-2), (
        f"Pallas path mismatch, max abs err {jnp.max(jnp.abs(out - ref))}")

    # --- Tiny-problem fast path (skips pallas_call entirely, full f32) ---
    out_small = neural_net2_forward(x[:8], w1, b1, w2, b2)
    out_small = jax.block_until_ready(out_small)
    assert out_small.shape == (8, num_classes)
    assert jnp.allclose(out_small, ref[:8], atol=1e-5, rtol=1e-5), \
        "fast path mismatch"

    print("KERNEL_OK")
</pallas_src>

<mosaic_0001>
module attributes {stable_mosaic.version = 11 : i64} {
  func.func @neural_net2_kernel(%arg0: i32, %arg1: memref<152x128xf32, #tpu.memory_space<vmem>>, %arg2: memref<128x128xbf16, #tpu.memory_space<vmem>>, %arg3: memref<1x128xf32, #tpu.memory_space<vmem>>, %arg4: memref<152x128xbf16, #tpu.memory_space<vmem>>) attributes {dimension_semantics = [#tpu.dimension_semantics<parallel>], iteration_bounds = array<i64: 2>, scalar_prefetch = 0 : i64, scratch_operands = 0 : i64, tpu.core_type = #tpu.core_type<tc>, window_params = [{transform_indices = @transform_0, window_bounds = array<i64: 152, 128>}, {pipeline_mode = #tpu.pipeline_mode<synchronous>, transform_indices = @transform_1, window_bounds = array<i64: 128, 128>}, {pipeline_mode = #tpu.pipeline_mode<synchronous>, transform_indices = @transform_2, window_bounds = array<i64: 1, 128>}, {transform_indices = @transform_3, window_bounds = array<i64: 152, 128>}]} {
    %c0 = arith.constant 0 : index
    %c0_0 = arith.constant 0 : index
    %0 = vector.load %arg1[%c0, %c0_0] : memref<152x128xf32, #tpu.memory_space<vmem>>, vector<152x128xf32>
    %1 = arith.truncf %0 : vector<152x128xf32> to vector<152x128xbf16>
    %c0_1 = arith.constant 0 : index
    %c0_2 = arith.constant 0 : index
    %2 = vector.load %arg2[%c0_1, %c0_2] : memref<128x128xbf16, #tpu.memory_space<vmem>>, vector<128x128xbf16>
    %cst = arith.constant dense<0.000000e+00> : vector<152x128xf32>
    %3 = tpu.matmul %1, %2, %cst {dimension_numbers = #tpu.dot_dimension_numbers<[1], [0], [0], [1], [0, 0, 1, 1], [], []>} : vector<152x128xbf16>, vector<128x128xbf16>, vector<152x128xf32> -> vector<152x128xf32>
    %c0_3 = arith.constant 0 : index
    %c0_4 = arith.constant 0 : index
    %4 = vector.load %arg3[%c0_3, %c0_4] : memref<1x128xf32, #tpu.memory_space<vmem>>, vector<1x128xf32>
    %5 = vector.broadcast %4 : vector<1x128xf32> to vector<152x128xf32>
    %6 = arith.addf %3, %5 : vector<152x128xf32>
    %7 = arith.truncf %6 : vector<152x128xf32> to vector<152x128xbf16>
    %c0_5 = arith.constant 0 : index
    %c0_6 = arith.constant 0 : index
    %8 = vector.load %arg4[%c0_5, %c0_6] : memref<152x128xbf16, #tpu.memory_space<vmem>>, vector<152x128xbf16>
    tpu.vector_store %arg4[%c0_5, %c0_6], %7 {strides = array<i32>} : memref<152x128xbf16, #tpu.memory_space<vmem>>, vector<152x128xbf16>,
    return
  }
  func.func @transform_0(%arg0: i32) -> (i32, i32) {
    %c0_i32 = arith.constant 0 : i32
    %c0_i32_0 = arith.constant 0 : i32
    return %arg0, %c0_i32 : i32, i32
  }
  func.func @transform_1(%arg0: i32) -> (i32, i32) {
    %c0_i32 = arith.constant 0 : i32
    %c0_i32_0 = arith.constant 0 : i32
    %c0_i32_1 = arith.constant 0 : i32
    return %c0_i32, %c0_i32_0 : i32, i32
  }
  func.func @transform_2(%arg0: i32) -> (i32, i32) {
    %c0_i32 = arith.constant 0 : i32
    %c0_i32_0 = arith.constant 0 : i32
    %c0_i32_1 = arith.constant 0 : i32
    return %c0_i32, %c0_i32_0 : i32, i32
  }
  func.func @transform_3(%arg0: i32) -> (i32, i32) {
    %c0_i32 = arith.constant 0 : i32
    %c0_i32_0 = arith.constant 0 : i32
    return %arg0, %c0_i32 : i32, i32
  }
}

</mosaic_0001>

<llo_original>
// kernel: tpu_custom_call.1
$region0: #{tpu_custom_call.1}
  #allocation0 [shape = 'u32[]', space=smem, size = 0x4, offset = 0x4, fixed_abs, tag = 'smem constant byte address 0x4 - core index']
  #allocation1 [shape = 'u32[144,128]{1,0:T(1,128)}', space=vmem, size = 0x12000, scoped, tag = 'internal scratch']
  %s0 = inlined_call_operand.hbm [shape: f32[300,128], index: 0, kind: input, shape index: {}]
  %s1 = inlined_call_operand.hbm [shape: bf16[128,128], index: 1, kind: input, shape index: {}]
  %s2 = inlined_call_operand.vmem [shape: f32[1,128], index: 2, kind: input, shape index: {}]
  %s3 = inlined_call_operand.hbm [shape: bf16[300,128], index: 3, kind: output, shape index: {}]
  %s4 = sld [smem:[#allocation0]]
  $region53: #{tpu_custom_call.1} parent=0
    _
  %s6 = ssub.s32 1, %s4
  %s7 = scalar_select 0, %s6, %s4
  $region1: #{tpu_custom_call.1} parent=0
    #allocation2 [shape = 'u8[155648]{0}', space=vmem, size = 0x26000, scoped, tag = 'input window, operand 0']
    #allocation3 [shape = 's32[2]{0}', space=sflag, size = 0x8, scoped, tag = 'scoped memory for tpu_custom_call.1']
    #allocation4 [shape = 's32[2]{0}', space=sflag, size = 0x8, scoped, tag = 'scoped memory for tpu_custom_call.1']
    #allocation5 [shape = 'u8[32768]{0}', space=vmem, size = 0x8000, scoped, tag = 'input window, operand 1, single buffered']
    #allocation6 [shape = 's32[1]{0}', space=sflag, size = 0x4, scoped, tag = 'scoped memory for tpu_custom_call.1']
    #allocation7 [shape = 'u8[77824]{0}', space=vmem, size = 0x13000, scoped, tag = 'output window, operand 0']
    %8 = vsyncpa [#allocation3], 0
    %s9 = scalar_lea.sflag [#allocation3], 1
    %10 = vsyncpa %s9, 0
    %11 = vsyncpa [#allocation6], 0
    %12 = vsyncpa [#allocation4], 0
    %s13 = scalar_lea.sflag [#allocation4], 1
    %14 = vsyncpa %s13, 0
    loop: start=0, step=1, limit=4
    $region2: #{tpu_custom_call.1} parent=1 // loop_pre_header
      _
    $region3: #{tpu_custom_call.1} parent=1 // loop_header
      %s16 = sphi 0, %s20
      %p17 = scmp.ge.s32.totalorder %s16, 4
      %s26 = sphi 0, %s28
      %s29 = sphi 0, %s26
      %s30 = sphi 0, %s29
      %s46 = sphi 0, %s30
      %s50 = sphi 0, %s50
      %s52 = sphi 0, %s50
      %s53 = sphi 0, %s52
      %s67 = sphi 0, %s53
      %s71 = sphi 0, %s71
      %s73 = sphi 0, %s71
      %s74 = sphi 0, %s73
      %s88 = sphi 0, %s74
      %s94 = sphi 0, %s96
      %s97 = sphi 0, %s94
      %s98 = sphi 0, %s97
      %s114 = sphi 0, %s98
    $region4: #{tpu_custom_call.1} parent=1 // loop_header_branch
      %19 = sbr.rel (%p17) target = $region8
    $region5: #{tpu_custom_call.1} parent=1 // loop_body
      %s21 = ssub.s32 %s16, 1
      %s22 = ssub.s32 %s16, 2
      %s23 = sadd.s32 %s16, 1
      %s24 = ssub.s32 %s16, %s23
      %p25 = scmp.eq.s32.totalorder %s24, 0
      %s27 = sadd.s32 %s26, 1
      %s28 = scalar_select %p25, %s26, %s27
      %p31 = pneg %p25
      %p32 = scmp.eq.s32.totalorder %s16, 1
      %p33 = por %p31, %p32
      %p34 = scmp.ne.s32.totalorder %s26, %s29
      %p35 = scmp.eq.s32.totalorder %s16, 0
      %p36 = por %p34, %p35
      %p37 = scmp.ne.s32.totalorder %s26, %s29
      %p38 = scmp.eq.s32.totalorder %s21, 1
      %p39 = por %p37, %p38
      %p40 = scmp.ne.s32.totalorder %s29, %s30
      %p41 = scmp.eq.s32.totalorder %s21, 0
      %p42 = por %p40, %p41
      %p43 = scmp.ne.s32.totalorder %s29, %s30
      %p44 = scmp.eq.s32.totalorder %s22, 1
      %p45 = por %p43, %p44
      %p47 = scmp.ne.s32.totalorder %s30, %s46
      %p48 = scmp.eq.s32.totalorder %s22, 0
      %p49 = por %p47, %p48
      %s51 = sadd.s32 %s50, 1
      %p54 = scmp.eq.s32.totalorder %s16, 1
      %p55 = scmp.ne.s32.totalorder %s50, %s52
      %p56 = scmp.eq.s32.totalorder %s16, 0
      %p57 = por %p55, %p56
      %p58 = scmp.ne.s32.totalorder %s50, %s52
      %p59 = scmp.eq.s32.totalorder %s21, 1
      %p60 = por %p58, %p59
      %p61 = scmp.ne.s32.totalorder %s52, %s53
      %p62 = scmp.eq.s32.totalorder %s21, 0
      %p63 = por %p61, %p62
      %p64 = scmp.ne.s32.totalorder %s52, %s53
      %p65 = scmp.eq.s32.totalorder %s22, 1
      %p66 = por %p64, %p65
      %p68 = scmp.ne.s32.totalorder %s53, %s67
      %p69 = scmp.eq.s32.totalorder %s22, 0
      %p70 = por %p68, %p69
      %s72 = sadd.s32 %s71, 1
      %p75 = scmp.eq.s32.totalorder %s16, 1
      %p76 = scmp.ne.s32.totalorder %s71, %s73
      %p77 = scmp.eq.s32.totalorder %s16, 0
      %p78 = por %p76, %p77
      %p79 = scmp.ne.s32.totalorder %s71, %s73
      %p80 = scmp.eq.s32.totalorder %s21, 1
      %p81 = por %p79, %p80
      %p82 = scmp.ne.s32.totalorder %s73, %s74
      %p83 = scmp.eq.s32.totalorder %s21, 0
      %p84 = por %p82, %p83
      %p85 = scmp.ne.s32.totalorder %s73, %s74
      %p86 = scmp.eq.s32.totalorder %s22, 1
      %p87 = por %p85, %p86
      %p89 = scmp.ne.s32.totalorder %s74, %s88
      %p90 = scmp.eq.s32.totalorder %s22, 0
      %p91 = por %p89, %p90
      %s92 = ssub.s32 %s16, %s23
      %p93 = scmp.eq.s32.totalorder %s92, 0
      %s95 = sadd.s32 %s94, 1
      %s96 = scalar_select %p93, %s94, %s95
      %p99 = pneg %p93
      %p100 = scmp.eq.s32.totalorder %s16, 1
      %p101 = por %p99, %p100
      %p102 = scmp.ne.s32.totalorder %s94, %s97
      %p103 = scmp.eq.s32.totalorder %s16, 0
      %p104 = por %p102, %p103
      %p105 = scmp.ne.s32.totalorder %s94, %s97
      %p106 = scmp.eq.s32.totalorder %s21, 1
      %p107 = por %p105, %p106
      %p108 = scmp.ne.s32.totalorder %s97, %s98
      %p109 = scmp.eq.s32.totalorder %s21, 0
      %p110 = por %p108, %p109
      %p111 = scmp.ne.s32.totalorder %s97, %s98
      %p112 = scmp.eq.s32.totalorder %s22, 1
      %p113 = por %p111, %p112
      %p115 = scmp.ne.s32.totalorder %s98, %s114
      %p116 = scmp.eq.s32.totalorder %s22, 0
      %p117 = por %p115, %p116
      %p118 = scmp.le.s32.totalorder 1, %s16
      %p119 = scmp.lt.s32.totalorder %s16, 3
      %p120 = pnand %p118, %p119
      %p121 = pneg %p120
      // Predicated region
      $region9: #{tpu_custom_call.1} parent=5 // pred_check
        _
      $region10: #{tpu_custom_call.1} parent=5 // pred_check_branch
        %123 = sbr.rel (%p120) target = $region12
      $region11: #{tpu_custom_call.1} parent=5 // pred_region
        %s124 = ssub.s32 %s16, 1
        // Predicated region
        $region13: #{tpu_custom_call.1} parent=11 // pred_check
          %p125 = pneg %p63
        $region14: #{tpu_custom_call.1} parent=11 // pred_check_branch
          %127 = sbr.rel (%p125) target = $region16
        $region15: #{tpu_custom_call.1} parent=11 // pred_region
          %s129 = ssub.s32 1024, 1024
          %130 = vsyncadd [#allocation6], %s129
          %s131 = sshll.u32 [#allocation5], 4
          %s132 = int_to_ptr.vmem [resolvable:$true] %s131
          %137 = dma.hbm_to_vmem [thread:$0]  %s1, 1024, %s132, [#allocation6], 64, 64, 4
        $region16: #{tpu_custom_call.1} parent=11 // pred_fallthru
          _
        // Predicated region
        $region17: #{tpu_custom_call.1} parent=11 // pred_check
          %p138 = pneg %p84
        $region18: #{tpu_custom_call.1} parent=11 // pred_check_branch
          %140 = sbr.rel (%p138) target = $region20
        $region19: #{tpu_custom_call.1} parent=11 // pred_region
          _
        $region20: #{tpu_custom_call.1} parent=11 // pred_fallthru
          _
      $region12: #{tpu_custom_call.1} parent=5 // pred_fallthru
        _
      %p141 = scmp.lt.s32.totalorder %s16, 2
      // Predicated region
      $region21: #{tpu_custom_call.1} parent=5 // pred_check
        %p142 = pneg %p141
      $region22: #{tpu_custom_call.1} parent=5 // pred_check_branch
        %144 = sbr.rel (%p142) target = $region24
      $region23: #{tpu_custom_call.1} parent=5 // pred_region
        // Predicated region
        $region25: #{tpu_custom_call.1} parent=23 // pred_check
          %p145 = pneg %p36
        $region26: #{tpu_custom_call.1} parent=23 // pred_check_branch
          %147 = sbr.rel (%p145) target = $region28
        $region27: #{tpu_custom_call.1} parent=23 // pred_region
          %s148 = sand.u32 %s26, 1
          %s149 = scalar_lea.sflag [#allocation3], %s148
          %s150 = sand.u32 %s26, 1
          %s151 = smul.addr %s150, 152
          %s152 = scalar_lea.vmem [#allocation2], %s151
          %s153 = smul.u32 19, %s16
          %s155 = ssub.s32 2432, 2432
          %156 = vsyncadd %s149, %s155
          %s157 = smul.addr %s153, 128
          %s158 = scalar_lea.hbm %s0, %s157
          %s159 = sshll.u32 %s152, 4
          %s160 = int_to_ptr.vmem [resolvable:$true] %s159
          %165 = dma.hbm_to_vmem [thread:$0]  %s158, 2432, %s160, %s149, 128, 128, 8
        $region28: #{tpu_custom_call.1} parent=23 // pred_fallthru
          _
      $region24: #{tpu_custom_call.1} parent=5 // pred_fallthru
        _
      %p166 = scmp.le.s32.totalorder 1, %s16
      %p167 = scmp.lt.s32.totalorder %s16, 3
      %p168 = pnand %p166, %p167
      %p169 = pneg %p168
      // Predicated region
      $region29: #{tpu_custom_call.1} parent=5 // pred_check
        _
      $region30: #{tpu_custom_call.1} parent=5 // pred_check_branch
        %171 = sbr.rel (%p168) target = $region32
      $region31: #{tpu_custom_call.1} parent=5 // pred_region
        %s172 = ssub.s32 %s16, 1
        %s173 = sand.u32 %s29, 1
        %s174 = scalar_lea.sflag [#allocation3], %s173
        %s175 = sand.u32 %s29, 1
        %s176 = smul.addr %s175, 152
        %s177 = scalar_lea.vmem [#allocation2], %s176
        // Predicated region
        $region33: #{tpu_custom_call.1} parent=31 // pred_check
          %p178 = pneg %p42
        $region34: #{tpu_custom_call.1} parent=31 // pred_check_branch
          %180 = sbr.rel (%p178) target = $region36
        $region35: #{tpu_custom_call.1} parent=31 // pred_region
          %181 = dma.done %s174, 2432
        $region36: #{tpu_custom_call.1} parent=31 // pred_fallthru
          _
        // Predicated region
        $region37: #{tpu_custom_call.1} parent=31 // pred_check
          %p182 = pneg %p63
        $region38: #{tpu_custom_call.1} parent=31 // pred_check_branch
          %184 = sbr.rel (%p182) target = $region40
        $region39: #{tpu_custom_call.1} parent=31 // pred_region
          %185 = dma.done [#allocation6], 1024
        $region40: #{tpu_custom_call.1} parent=31 // pred_fallthru
          _
        %s186 = sand.u32 %s29, 1
        %s187 = scalar_lea.sflag [#allocation3], %s186
        %s188 = sand.u32 %s29, 1
        %s189 = smul.addr %s188, 152
        %s190 = scalar_lea.vmem [#allocation2], %s189
        %p191 = pneg %p42
        %p192 = pneg %p39
        %p193 = pneg %p63
        %p194 = pneg %p60
        %p195 = pneg %p84
        %p196 = pneg %p81
        %p197 = pneg %p110
        %p198 = pneg %p107
        %s199 = sand.u32 %s97, 1
        %s200 = scalar_lea.sflag [#allocation4], %s199
        %s201 = sand.u32 %s97, 1
        %s202 = smul.addr %s201, 76
        %s203 = scalar_lea.vmem [#allocation7], %s202
        %s204 = smul.u32 19, %s21
        %s205 = smul.u32 19, %s21
        %v207 = vld [vmem:[%s177] sm:$0xff]
        %v208 = vld [vmem:[%s177 + $0x8] sm:$0xff]
        %v209 = vld [vmem:[%s177 + $0x10] sm:$0xff]
        %v210 = vld [vmem:[%s177 + $0x18] sm:$0xff]
        %v211 = vld [vmem:[%s177 + $0x20] sm:$0xff]
        %v212 = vld [vmem:[%s177 + $0x28] sm:$0xff]
        %v213 = vld [vmem:[%s177 + $0x30] sm:$0xff]
        %v214 = vld [vmem:[%s177 + $0x38] sm:$0xff]
        %v215 = vld [vmem:[%s177 + $0x40] sm:$0xff]
        %v216 = vld [vmem:[%s177 + $0x48] sm:$0xff]
        %v217 = vld [vmem:[%s177 + $0x50] sm:$0xff]
        %v218 = vld [vmem:[%s177 + $0x58] sm:$0xff]
        %v219 = vld [vmem:[%s177 + $0x60] sm:$0xff]
        %v220 = vld [vmem:[%s177 + $0x68] sm:$0xff]
        %v221 = vld [vmem:[%s177 + $0x70] sm:$0xff]
        %v222 = vld [vmem:[%s177 + $0x78] sm:$0xff]
        %v223 = vld [vmem:[%s177 + $0x80] sm:$0xff]
        %v224 = vld [vmem:[%s177 + $0x88] sm:$0xff]
        %v225 = vld [vmem:[%s177 + $0x90] sm:$0xff]
        %v226 = vpack.c.bf16 %v208, %v207
        %v227 = vpack.c.bf16 %v210, %v209
        %v228 = vpack.c.bf16 %v212, %v211
        %v229 = vpack.c.bf16 %v214, %v213
        %v230 = vpack.c.bf16 %v216, %v215
        %v231 = vpack.c.bf16 %v218, %v217
        %v232 = vpack.c.bf16 %v220, %v219
        %v233 = vpack.c.bf16 %v222, %v221
        %v234 = vpack.c.bf16 %v224, %v223
        %v235 = vpack.c.bf16 %v225, %v225
        %v236 = vld [vmem:[#allocation5] sm:$0xf]
        %v237 = vld [vmem:[#allocation5 + $0x4] sm:$0xf]
        %v238 = vld [vmem:[#allocation5 + $0x8] sm:$0xf]
        %v239 = vld [vmem:[#allocation5 + $0xc] sm:$0xf]
        %v240 = vld [vmem:[#allocation5 + $0x10] sm:$0xf]
        %v241 = vld [vmem:[#allocation5 + $0x14] sm:$0xf]
        %v242 = vld [vmem:[#allocation5 + $0x18] sm:$0xf]
        %v243 = vld [vmem:[#allocation5 + $0x1c] sm:$0xf]
        %v244 = vld [vmem:[#allocation5 + $0x20] sm:$0xf]
        %v245 = vld [vmem:[#allocation5 + $0x24] sm:$0xf]
        %v246 = vld [vmem:[#allocation5 + $0x28] sm:$0xf]
        %v247 = vld [vmem:[#allocation5 + $0x2c] sm:$0xf]
        %v248 = vld [vmem:[#allocation5 + $0x30] sm:$0xf]
        %v249 = vld [vmem:[#allocation5 + $0x34] sm:$0xf]
        %v250 = vld [vmem:[#allocation5 + $0x38] sm:$0xf]
        %v251 = vld [vmem:[#allocation5 + $0x3c] sm:$0xf]
        %v252 = vld [vmem:[%s2] sm:$0x1]
        %v254 = vlaneseq
        %v255 = vshrl.u32 %v254, 7
        %v256 = vsub.s32 0, %v255
        %v257 = vrot.slane %v252, %v256
        %v275 = vunpack.c.l.b16 %v236
        %v276 = vunpack.c.l.b16 %v237
        %v277 = vunpack.c.l.b16 %v238
        %v278 = vunpack.c.l.b16 %v239
        %v279 = vunpack.c.l.b16 %v240
        %v280 = vunpack.c.l.b16 %v241
        %v281 = vunpack.c.l.b16 %v242
        %v282 = vunpack.c.l.b16 %v243
        %v283 = vunpack.c.l.b16 %v244
        %v284 = vunpack.c.l.b16 %v245
        %v285 = vunpack.c.l.b16 %v246
        %v286 = vunpack.c.l.b16 %v247
        %v287 = vunpack.c.l.b16 %v248
        %v288 = vunpack.c.l.b16 %v249
        %v289 = vunpack.c.l.b16 %v250
        %v290 = vunpack.c.l.b16 %v251
        %v291 = vpack.c.b16 %v276, %v275
        %v292 = vpack.c.b16 %v278, %v277
        %v293 = vpack.c.b16 %v280, %v279
        %v294 = vpack.c.b16 %v282, %v281
        %v295 = vpack.c.b16 %v284, %v283
        %v296 = vpack.c.b16 %v286, %v285
        %v297 = vpack.c.b16 %v288, %v287
        %v298 = vpack.c.b16 %v290, %v289
        %307 = vmatprep.subr.bf16.mxu0 0
        %308 = vmatpush1.bf16.msra.mxu0 %v298
        %309 = vmatprep.subr.bf16.mxu0 0
        %310 = vmatpush1.bf16.msra.mxu0 %v297
        %311 = vmatprep.subr.bf16.mxu0 0
        %312 = vmatpush1.bf16.msra.mxu0 %v296
        %313 = vmatprep.subr.bf16.mxu0 0
        %314 = vmatpush1.bf16.msra.mxu0 %v295
        %315 = vmatprep.subr.bf16.mxu0 0
        %316 = vmatpush1.bf16.msra.mxu0 %v294
        %317 = vmatprep.subr.bf16.mxu0 0
        %318 = vmatpush1.bf16.msra.mxu0 %v293
        %319 = vmatprep.subr.bf16.mxu0 0
        %320 = vmatpush1.bf16.msra.mxu0 %v292
        %321 = vmatprep.subr.bf16.mxu0 0
        %322 = vmatpush1.bf16.msra.mxu0 %v291
        %323 = vmatprep.subr.bf16.mxu0 0
        %324 = vmatpush2.bf16.msra.mxu0 0
        %325 = vmatprep.subr.bf16.mxu0 0
        %326 = vmatpush2.bf16.msra.mxu0 0
        %327 = vmatprep.subr.bf16.mxu0 0
        %328 = vmatpush2.bf16.msra.mxu0 0
        %329 = vmatprep.subr.bf16.mxu0 0
        %330 = vmatpush2.bf16.msra.mxu0 0
        %331 = vmatprep.subr.bf16.mxu0 0
        %332 = vmatpush2.bf16.msra.mxu0 0
        %333 = vmatprep.subr.bf16.mxu0 0
        %334 = vmatpush2.bf16.msra.mxu0 0
        %335 = vmatprep.subr.bf16.mxu0 0
        %336 = vmatpush2.bf16.msra.mxu0 0
        %337 = vmatprep.subr.bf16.mxu0 0
        %338 = vmatpush2.bf16.msra.mxu0 0
        %339 = vmatprep.mubr.bf16.mxu0 0
        %340 = vmatmul.mubr.bf16.gmra.mxu0 %v226
        %v341 = vpop.f32.mrf.mxu0
        %v342 = vadd.f32 %v257, %v341
        %v343 = vpop.f32.mrf.mxu0
        %v344 = vpop.f32.mrf.mxu0
        %v345 = vadd.f32 %v257, %v344
        %v346 = vpop.f32.mrf.mxu0
        %347 = vmatprep.mubr.bf16.mxu0 0
        %348 = vmatmul.mubr.bf16.gmra.mxu0 %v227
        %v349 = vpop.f32.mrf.mxu0
        %v350 = vadd.f32 %v257, %v349
        %v351 = vpop.f32.mrf.mxu0
        %v352 = vpop.f32.mrf.mxu0
        %v353 = vadd.f32 %v257, %v352
        %v354 = vpop.f32.mrf.mxu0
        %355 = vmatprep.mubr.bf16.mxu0 0
        %356 = vmatmul.mubr.bf16.gmra.mxu0 %v228
        %v357 = vpop.f32.mrf.mxu0
        %v358 = vadd.f32 %v257, %v357
        %v359 = vpop.f32.mrf.mxu0
        %v360 = vpop.f32.mrf.mxu0
        %v361 = vadd.f32 %v257, %v360
        %v362 = vpop.f32.mrf.mxu0
        %363 = vmatprep.mubr.bf16.mxu0 0
        %364 = vmatmul.mubr.bf16.gmra.mxu0 %v229
        %v365 = vpop.f32.mrf.mxu0
        %v366 = vadd.f32 %v257, %v365
        %v367 = vpop.f32.mrf.mxu0
        %v368 = vpop.f32.mrf.mxu0
        %v369 = vadd.f32 %v257, %v368
        %v370 = vpop.f32.mrf.mxu0
        %371 = vmatprep.mubr.bf16.mxu0 0
        %372 = vmatmul.mubr.bf16.gmra.mxu0 %v230
        %v373 = vpop.f32.mrf.mxu0
        %v374 = vadd.f32 %v257, %v373
        %v375 = vpop.f32.mrf.mxu0
        %v376 = vpop.f32.mrf.mxu0
        %v377 = vadd.f32 %v257, %v376
        %v378 = vpop.f32.mrf.mxu0
        %379 = vmatprep.mubr.bf16.mxu0 0
        %380 = vmatmul.mubr.bf16.gmra.mxu0 %v231
        %v381 = vpop.f32.mrf.mxu0
        %v382 = vadd.f32 %v257, %v381
        %v383 = vpop.f32.mrf.mxu0
        %v384 = vpop.f32.mrf.mxu0
        %v385 = vadd.f32 %v257, %v384
        %v386 = vpop.f32.mrf.mxu0
        %387 = vmatprep.mubr.bf16.mxu0 0
        %388 = vmatmul.mubr.bf16.gmra.mxu0 %v232
        %v389 = vpop.f32.mrf.mxu0
        %v390 = vadd.f32 %v257, %v389
        %v391 = vpop.f32.mrf.mxu0
        %v392 = vpop.f32.mrf.mxu0
        %v393 = vadd.f32 %v257, %v392
        %v394 = vpop.f32.mrf.mxu0
        %395 = vmatprep.mubr.bf16.mxu0 0
        %396 = vmatmul.mubr.bf16.gmra.mxu0 %v233
        %v397 = vpop.f32.mrf.mxu0
        %v398 = vadd.f32 %v257, %v397
        %v399 = vpop.f32.mrf.mxu0
        %v400 = vpop.f32.mrf.mxu0
        %v401 = vadd.f32 %v257, %v400
        %v402 = vpop.f32.mrf.mxu0
        %403 = vmatprep.mubr.bf16.mxu0 0
        %404 = vmatmul.mubr.bf16.gmra.mxu0 %v234
        %v405 = vpop.f32.mrf.mxu0
        %v406 = vadd.f32 %v257, %v405
        %v407 = vpop.f32.mrf.mxu0
        %v408 = vpop.f32.mrf.mxu0
        %v409 = vadd.f32 %v257, %v408
        %v410 = vpop.f32.mrf.mxu0
        %411 = vmatprep.mubr.bf16.mxu0 0
        %412 = vmatmul.mubr.bf16.gmra.mxu0 %v235
        %v413 = vpop.f32.mrf.mxu0
        %v414 = vadd.f32 %v257, %v413
        %v415 = vpop.f32.mrf.mxu0
        %v416 = vpop.f32.mrf.mxu0
        %v417 = vpop.f32.mrf.mxu0
        %418 = vdwg.mxu0
        %v419 = vpack.c.bf16 %v345, %v342
        %v420 = vpack.c.bf16 %v353, %v350
        %v421 = vpack.c.bf16 %v361, %v358
        %v422 = vpack.c.bf16 %v369, %v366
        %v423 = vpack.c.bf16 %v377, %v374
        %v424 = vpack.c.bf16 %v385, %v382
        %v425 = vpack.c.bf16 %v393, %v390
        %v426 = vpack.c.bf16 %v401, %v398
        %v427 = vpack.c.bf16 %v409, %v406
        %v428 = vpack.c.bf16 %v414, %v414
        %v439 = vunpack.c.l.b16 %v419
        %v440 = vunpack.c.h.b16 %v419
        %v441 = vunpack.c.l.b16 %v420
        %v442 = vunpack.c.h.b16 %v420
        %v443 = vunpack.c.l.b16 %v421
        %v444 = vunpack.c.h.b16 %v421
        %v445 = vunpack.c.l.b16 %v422
        %v446 = vunpack.c.h.b16 %v422
        %v447 = vunpack.c.l.b16 %v423
        %v448 = vunpack.c.h.b16 %v423
        %v449 = vunpack.c.l.b16 %v424
        %v450 = vunpack.c.h.b16 %v424
        %v451 = vunpack.c.l.b16 %v425
        %v452 = vunpack.c.h.b16 %v425
        %v453 = vunpack.c.l.b16 %v426
        %v454 = vunpack.c.h.b16 %v426
        %v455 = vunpack.c.l.b16 %v427
        %v456 = vunpack.c.h.b16 %v427
        %v457 = vunpack.c.l.b16 %v428
        %v458 = vpack.c.b16 %v439, %v439
        %v459 = vpack.c.b16 %v440, %v440
        %v460 = vpack.c.b16 %v441, %v441
        %v461 = vpack.c.b16 %v442, %v442
        %v462 = vpack.c.b16 %v443, %v443
        %v463 = vpack.c.b16 %v444, %v444
        %v464 = vpack.c.b16 %v445, %v445
        %v465 = vpack.c.b16 %v446, %v446
        %v466 = vpack.c.b16 %v447, %v447
        %v467 = vpack.c.b16 %v448, %v448
        %v468 = vpack.c.b16 %v449, %v449
        %v469 = vpack.c.b16 %v450, %v450
        %v470 = vpack.c.b16 %v451, %v451
        %v471 = vpack.c.b16 %v452, %v452
        %v472 = vpack.c.b16 %v453, %v453
        %v473 = vpack.c.b16 %v454, %v454
        %v474 = vpack.c.b16 %v455, %v455
        %v475 = vpack.c.b16 %v456, %v456
        %v476 = vpack.c.b16 %v457, %v457
        %496 = vst [vmem:[%s203] sm:$0xf] %v458
        %497 = vst [vmem:[%s203 + $0x4] sm:$0xf] %v459
        %498 = vst [vmem:[%s203 + $0x8] sm:$0xf] %v460
        %499 = vst [vmem:[%s203 + $0xc] sm:$0xf] %v461
        %500 = vst [vmem:[%s203 + $0x10] sm:$0xf] %v462
        %501 = vst [vmem:[%s203 + $0x14] sm:$0xf] %v463
        %502 = vst [vmem:[%s203 + $0x18] sm:$0xf] %v464
        %503 = vst [vmem:[%s203 + $0x1c] sm:$0xf] %v465
        %504 = vst [vmem:[%s203 + $0x20] sm:$0xf] %v466
        %505 = vst [vmem:[%s203 + $0x24] sm:$0xf] %v467
        %506 = vst [vmem:[%s203 + $0x28] sm:$0xf] %v468
        %507 = vst [vmem:[%s203 + $0x2c] sm:$0xf] %v469
        %508 = vst [vmem:[%s203 + $0x30] sm:$0xf] %v470
        %509 = vst [vmem:[%s203 + $0x34] sm:$0xf] %v471
        %510 = vst [vmem:[%s203 + $0x38] sm:$0xf] %v472
        %511 = vst [vmem:[%s203 + $0x3c] sm:$0xf] %v473
        %512 = vst [vmem:[%s203 + $0x40] sm:$0xf] %v474
        %513 = vst [vmem:[%s203 + $0x44] sm:$0xf] %v475
        %514 = vst [vmem:[%s203 + $0x48] sm:$0xf] %v476
        %s515 = sand.u32 %s97, 1
        %s516 = scalar_lea.sflag [#allocation4], %s515
        %s517 = sand.u32 %s97, 1
        %s518 = smul.addr %s517, 76
        %s519 = scalar_lea.vmem [#allocation7], %s518
        // Predicated region
        $region41: #{tpu_custom_call.1} parent=31 // pred_check
          %p520 = pneg %p107
        $region42: #{tpu_custom_call.1} parent=31 // pred_check_branch
          %522 = sbr.rel (%p520) target = $region44
        $region43: #{tpu_custom_call.1} parent=31 // pred_region
          %s523 = smul.u32 19, %s21
          %s525 = ssub.s32 1216, 1216
          %526 = vsyncadd %s516, %s525
          %s527 = smul.addr %s523, 64
          %s528 = scalar_lea.hbm %s3, %s527
          %s529 = sshll.u32 %s519, 4
          %s530 = int_to_ptr.vmem [resolvable:$true] %s529
          %535 = dma.vmem_to_hbm [thread:$0]  %s530, 1216, %s528, %s516, 64, 64, 4
        $region44: #{tpu_custom_call.1} parent=31 // pred_fallthru
          _
      $region32: #{tpu_custom_call.1} parent=5 // pred_fallthru
        _
      %p536 = scmp.le.s32.totalorder 2, %s16
      // Predicated region
      $region45: #{tpu_custom_call.1} parent=5 // pred_check
        %p537 = pneg %p536
      $region46: #{tpu_custom_call.1} parent=5 // pred_check_branch
        %539 = sbr.rel (%p537) target = $region48
      $region47: #{tpu_custom_call.1} parent=5 // pred_region
        %s540 = ssub.s32 %s16, 2
        // Predicated region
        $region49: #{tpu_custom_call.1} parent=47 // pred_check
          %p541 = pneg %p113
        $region50: #{tpu_custom_call.1} parent=47 // pred_check_branch
          %543 = sbr.rel (%p541) target = $region52
        $region51: #{tpu_custom_call.1} parent=47 // pred_region
          %s544 = sand.u32 %s98, 1
          %s545 = scalar_lea.sflag [#allocation4], %s544
          %s546 = sand.u32 %s98, 1
          %s547 = smul.addr %s546, 76
          %s548 = scalar_lea.vmem [#allocation7], %s547
          %549 = dma.done %s545, 1216
        $region52: #{tpu_custom_call.1} parent=47 // pred_fallthru
          _
      $region48: #{tpu_custom_call.1} parent=5 // pred_fallthru
        _
    $region6: #{tpu_custom_call.1} parent=1 // loop_footer
      %s20 = sadd.s32 1, %s16
    $region7: #{tpu_custom_call.1} parent=1 // loop_footer_branch
      %15 = sbr.rel target = $region3
    $region8: #{tpu_custom_call.1} parent=1 // loop_exit
      _
    %550 = vsyncpa [#allocation3], 1
    %s551 = scalar_lea.sflag [#allocation3], 1
    %552 = vsyncpa %s551, 1
    %553 = vsyncpa [#allocation6], 1
    %554 = vsyncpa [#allocation4], 1
    %s555 = scalar_lea.sflag [#allocation4], 1
    %556 = vsyncpa %s555, 1

</llo_original>
